<compile_context>
chip_gen: v7x
topology: tpu7x:2x2x1
jax: 0.10.0
libtpu: 0.0.40
codegen_flags: <defaults>
</compile_context>

<pallas_src>
import functools

import jax
import jax.numpy as jnp
from jax import lax
from jax.experimental import pallas as pl
from jax.experimental.pallas import tpu as pltpu

EPS = 1e-5  # torch.nn.LayerNorm default

# Tables at or below this size take the VMEM-resident (one-hot MXU) path.
_FAST_PATH_TABLE_BYTES = 4 * 1024 * 1024
_FAST_PATH_MAX_VOCAB = 4096


def _round_up(x, m):
    return (x + m - 1) // m * m


def _layernorm(x, gamma, beta, out_dtype):
    # x: (tile, D) f32; gamma/beta: (1, D) f32. Biased variance, eps=1e-5,
    # f32 accumulation -- matches torch.nn.LayerNorm.
    mean = jnp.mean(x, axis=-1, keepdims=True)
    xc = x - mean
    var = jnp.mean(xc * xc, axis=-1, keepdims=True)
    y = xc * lax.rsqrt(var + EPS)
    return (y * gamma + beta).astype(out_dtype)


def _gather_ln_kernel(ids_ref, table_ref, gamma_ref, beta_ref, out_ref,
                      buf_ref, sem):
    """HBM embedding-row gather + LayerNorm, double-buffered across grid steps.

    ids_ref   : (n_steps, tile) int32 in SMEM (scalar prefetch)
    table_ref : (V, D) raw HBM ref (memory_space=pl.ANY) -- manual row gather
    gamma_ref : (1, D) f32     beta_ref : (1, D) f32     (resident in VMEM)
    out_ref   : (tile, D)      buf_ref  : (2, tile, D) VMEM double buffer
    sem       : (2,) DMA semaphores, one per buffer slot
    """
    tile = out_ref.shape[0]
    i = pl.program_id(0)
    n = pl.num_programs(0)
    slot = i % 2

    def issue(step, slot_):
        # One DMA per gathered row: table[ids[step, r], :] -> buf[slot_, r, :].
        def body(r, carry):
            row = ids_ref[step, r]
            pltpu.make_async_copy(
                table_ref.at[pl.ds(row, 1)],
                buf_ref.at[slot_, pl.ds(r, 1)],
                sem.at[slot_],
            ).start()
            return carry
        lax.fori_loop(0, tile, body, 0, unroll=8)

    # Prime the pipeline: the very first step gathers its own rows.
    @pl.when(i == 0)
    def _():
        issue(0, 0)

    # Prefetch the NEXT step's rows into the other slot before computing, so
    # the gather latency hides behind this step's LayerNorm + store.
    @pl.when(i + 1 < n)
    def _():
        issue(i + 1, 1 - slot)

    # Single aggregated wait: the tile single-row copies started on sem[slot]
    # total exactly tile*D*itemsize bytes == one (tile, D) descriptor.
    # Invariant: every copy signaled on sem[slot] targets buf[slot] only.
    pltpu.make_async_copy(buf_ref.at[slot], buf_ref.at[slot],
                          sem.at[slot]).wait()

    x = buf_ref[slot].astype(jnp.float32)
    out_ref[...] = _layernorm(x, gamma_ref[...], beta_ref[...], out_ref.dtype)


def _small_vocab_ln_kernel(ids_ref, table_ref, gamma_ref, beta_ref, out_ref):
    """VMEM-resident-table fast path: one-hot MXU gather + LayerNorm.

    ids_ref: (tile, 1) int32, table_ref: (V, D) resident across the grid.
    """
    tile = out_ref.shape[0]
    v = table_ref.shape[0]
    onehot = (ids_ref[...] ==
              lax.broadcasted_iota(jnp.int32, (tile, v), 1)).astype(jnp.float32)
    x = jnp.dot(onehot, table_ref[...].astype(jnp.float32),
                preferred_element_type=jnp.float32)
    out_ref[...] = _layernorm(x, gamma_ref[...], beta_ref[...], out_ref.dtype)


@functools.partial(jax.jit, static_argnames=("tile", "force_hbm_gather"))
def gene_encoder(ids, table, gamma, beta, *, tile=512, force_hbm_gather=False):
    """LayerNorm(Embedding(ids)).

    ids:   (B, S) integer gene ids (out-of-range ids are clamped; torch raises)
    table: (V, D) embedding weight;  gamma/beta: (D,) LayerNorm affine params.
    Returns (B, S, D) in table.dtype.
    """
    B, S = ids.shape
    V, D = table.shape
    N = B * S

    # Rows per grid step: large enough to amortize the ~0.35us/step overhead
    # and keep many row DMAs in flight; multiple of 8; clamped for tiny N.
    tile = max(8, _round_up(min(tile, _round_up(N, 8)), 8))
    n_pad = _round_up(N, tile)
    grid = n_pad // tile

    ids_flat = jnp.clip(ids.reshape(N).astype(jnp.int32), 0, V - 1)
    if n_pad != N:
        ids_flat = jnp.concatenate(
            [ids_flat, jnp.zeros((n_pad - N,), jnp.int32)])

    # LayerNorm affine params stay f32 end-to-end.
    gamma_2d = gamma.reshape(1, D).astype(jnp.float32)
    beta_2d = beta.reshape(1, D).astype(jnp.float32)

    itemsize = jnp.dtype(table.dtype).itemsize
    table_bytes = V * D * itemsize
    use_fast = (not force_hbm_gather
                and table_bytes <= _FAST_PATH_TABLE_BYTES
                and V <= _FAST_PATH_MAX_VOCAB)

    # Explicit scoped-VMEM budget (v5e default is only 16 MiB).
    need = 4 * tile * D * itemsize + 4 * D * 4 + (2 << 20)
    if use_fast:
        need += table_bytes + tile * (V + D) * 4
    vmem_limit = int(min(max(need, 32 << 20), 64 << 20))

    if use_fast:
        out = pl.pallas_call(
            _small_vocab_ln_kernel,
            out_shape=jax.ShapeDtypeStruct((n_pad, D), table.dtype),
            grid=(grid,),
            in_specs=[
                pl.BlockSpec((tile, 1), lambda i: (i, 0)),   # ids (per tile)
                pl.BlockSpec((V, D), lambda i: (0, 0)),      # table (resident)
                pl.BlockSpec((1, D), lambda i: (0, 0)),      # LN weight
                pl.BlockSpec((1, D), lambda i: (0, 0)),      # LN bias
            ],
            out_specs=pl.BlockSpec((tile, D), lambda i: (i, 0)),
            compiler_params=pltpu.CompilerParams(
                dimension_semantics=("parallel",),
                vmem_limit_bytes=vmem_limit),
        )(ids_flat.reshape(n_pad, 1), table, gamma_2d, beta_2d)
    else:
        out = pl.pallas_call(
            _gather_ln_kernel,
            out_shape=jax.ShapeDtypeStruct((n_pad, D), table.dtype),
            grid_spec=pltpu.PrefetchScalarGridSpec(
                num_scalar_prefetch=1,                        # ids -> SMEM
                grid=(grid,),
                in_specs=[
                    pl.BlockSpec(memory_space=pl.ANY),            # table (HBM)
                    pl.BlockSpec((1, D), lambda i, ids: (0, 0)),  # LN weight
                    pl.BlockSpec((1, D), lambda i, ids: (0, 0)),  # LN bias
                ],
                out_specs=pl.BlockSpec((tile, D), lambda i, ids: (i, 0)),
                scratch_shapes=[
                    pltpu.VMEM((2, tile, D), table.dtype),  # gather dbl-buffer
                    pltpu.SemaphoreType.DMA((2,)),          # one sem per slot
                ],
            ),
            compiler_params=pltpu.CompilerParams(
                # Cross-step double-buffer state lives in scratch -> sequential.
                dimension_semantics=("arbitrary",),
                vmem_limit_bytes=vmem_limit),
        )(ids_flat.reshape(grid, tile), table, gamma_2d, beta_2d)

    if n_pad != N:
        out = out[:N]
    return out.reshape(B, S, D)


def gene_encoder_ref(ids, table, gamma, beta):
    x = table[jnp.clip(ids, 0, table.shape[0] - 1)]
    mean = jnp.mean(x, axis=-1, keepdims=True)
    var = jnp.mean((x - mean) ** 2, axis=-1, keepdims=True)
    return (x - mean) / jnp.sqrt(var + EPS) * gamma + beta


if __name__ == "__main__":
    # Small shapes consistent with the module: vocab of 64 gene ids,
    # embedding_dim=128 (lane-dense output stores), batch=2, seq=8.
    V, D, B, S = 64, 128, 2, 8
    key = jax.random.PRNGKey(0)
    k_ids, k_tab, k_g, k_b, k_ids2 = jax.random.split(key, 5)

    ids = jax.random.randint(k_ids, (B, S), 0, V, dtype=jnp.int32)
    # nn.Embedding default init: N(0, 1); non-trivial LayerNorm affine params.
    table = jax.random.normal(k_tab, (V, D), dtype=jnp.float32)
    gamma = 1.0 + 0.1 * jax.random.normal(k_g, (D,), dtype=jnp.float32)
    beta = 0.1 * jax.random.normal(k_b, (D,), dtype=jnp.float32)

    ref = gene_encoder_ref(ids, table, gamma, beta)

    # 1) Small-vocab fast path (table resident in VMEM, one-hot MXU gather).
    out_fast = jax.block_until_ready(gene_encoder(ids, table, gamma, beta))
    assert out_fast.shape == (B, S, D)
    assert jnp.allclose(out_fast, ref, atol=1e-5, rtol=1e-5), "fast path mismatch"

    # 2) HBM row-gather path with cross-step double buffering (tile=8 -> grid=2).
    out_hbm = jax.block_until_ready(
        gene_encoder(ids, table, gamma, beta, tile=8, force_hbm_gather=True))
    assert jnp.allclose(out_hbm, ref, atol=1e-5, rtol=1e-5), "gather path mismatch"

    # 3) Padded tail (seq length not a multiple of the tile), gather path.
    ids2 = jax.random.randint(k_ids2, (2, 13), 0, V, dtype=jnp.int32)
    ref2 = gene_encoder_ref(ids2, table, gamma, beta)
    out2 = jax.block_until_ready(
        gene_encoder(ids2, table, gamma, beta, tile=16, force_hbm_gather=True))
    assert out2.shape == (2, 13, D)
    assert jnp.allclose(out2, ref2, atol=1e-5, rtol=1e-5), "padded-tail mismatch"

    print("KERNEL_OK")
</pallas_src>

<mosaic_0001>
module attributes {stable_mosaic.version = 11 : i64} {
  func.func @_small_vocab_ln_kernel(%arg0: i32, %arg1: memref<16x1xi32, #tpu.memory_space<vmem>>, %arg2: memref<64x128xf32, #tpu.memory_space<vmem>>, %arg3: memref<1x128xf32, #tpu.memory_space<vmem>>, %arg4: memref<1x128xf32, #tpu.memory_space<vmem>>, %arg5: memref<16x128xf32, #tpu.memory_space<vmem>>) attributes {dimension_semantics = [#tpu.dimension_semantics<parallel>], iteration_bounds = array<i64: 1>, scalar_prefetch = 0 : i64, scratch_operands = 0 : i64, tpu.core_type = #tpu.core_type<tc>, window_params = [{transform_indices = @transform_0, window_bounds = array<i64: 16, 1>}, {pipeline_mode = #tpu.pipeline_mode<synchronous>, transform_indices = @transform_1, window_bounds = array<i64: 64, 128>}, {pipeline_mode = #tpu.pipeline_mode<synchronous>, transform_indices = @transform_2, window_bounds = array<i64: 1, 128>}, {pipeline_mode = #tpu.pipeline_mode<synchronous>, transform_indices = @transform_3, window_bounds = array<i64: 1, 128>}, {transform_indices = @transform_4, window_bounds = array<i64: 16, 128>}]} {
    %c0 = arith.constant 0 : index
    %c0_0 = arith.constant 0 : index
    %0 = vector.load %arg1[%c0, %c0_0] : memref<16x1xi32, #tpu.memory_space<vmem>>, vector<16x1xi32>
    %1 = tpu.iota {dimensions = array<i32: 1>} : vector<16x64xi32>
    %2 = vector.broadcast %0 : vector<16x1xi32> to vector<16x64xi32>
    %3 = arith.cmpi eq, %2, %1 : vector<16x64xi32>
    %4 = arith.extui %3 : vector<16x64xi1> to vector<16x64xi32>
    %5 = arith.sitofp %4 : vector<16x64xi32> to vector<16x64xf32>
    %c0_1 = arith.constant 0 : index
    %c0_2 = arith.constant 0 : index
    %6 = vector.load %arg2[%c0_1, %c0_2] : memref<64x128xf32, #tpu.memory_space<vmem>>, vector<64x128xf32>
    %cst = arith.constant dense<0.000000e+00> : vector<16x128xf32>
    %7 = tpu.matmul %5, %6, %cst {dimension_numbers = #tpu.dot_dimension_numbers<[1], [0], [0], [1], [0, 0, 1, 1], [], []>} : vector<16x64xf32>, vector<64x128xf32>, vector<16x128xf32> -> vector<16x128xf32>
    %c0_3 = arith.constant 0 : index
    %c0_4 = arith.constant 0 : index
    %8 = vector.load %arg3[%c0_3, %c0_4] : memref<1x128xf32, #tpu.memory_space<vmem>>, vector<1x128xf32>
    %c0_5 = arith.constant 0 : index
    %c0_6 = arith.constant 0 : index
    %9 = vector.load %arg4[%c0_5, %c0_6] : memref<1x128xf32, #tpu.memory_space<vmem>>, vector<1x128xf32>
    %cst_7 = arith.constant dense<0.000000e+00> : vector<16xf32>
    %10 = vector.multi_reduction <add>, %7, %cst_7 [1] : vector<16x128xf32> to vector<16xf32>
    %11 = vector.shape_cast %10 : vector<16xf32> to vector<16x1xf32>
    %cst_8 = arith.constant 1.280000e+02 : f32
    %12 = vector.broadcast %cst_8 : f32 to vector<16x1xf32>
    %13 = arith.divf %11, %12 : vector<16x1xf32>
    %14 = vector.broadcast %13 : vector<16x1xf32> to vector<16x128xf32>
    %15 = arith.subf %7, %14 : vector<16x128xf32>
    %16 = arith.mulf %15, %15 : vector<16x128xf32>
    %cst_9 = arith.constant dense<0.000000e+00> : vector<16xf32>
    %17 = vector.multi_reduction <add>, %16, %cst_9 [1] : vector<16x128xf32> to vector<16xf32>
    %18 = vector.shape_cast %17 : vector<16xf32> to vector<16x1xf32>
    %cst_10 = arith.constant 1.280000e+02 : f32
    %19 = vector.broadcast %cst_10 : f32 to vector<16x1xf32>
    %20 = arith.divf %18, %19 : vector<16x1xf32>
    %cst_11 = arith.constant 9.99999974E-6 : f32
    %21 = vector.broadcast %cst_11 : f32 to vector<16x1xf32>
    %22 = arith.addf %20, %21 : vector<16x1xf32>
    %23 = math.rsqrt %22 : vector<16x1xf32>
    %24 = vector.broadcast %23 : vector<16x1xf32> to vector<16x128xf32>
    %25 = arith.mulf %15, %24 : vector<16x128xf32>
    %26 = vector.broadcast %8 : vector<1x128xf32> to vector<16x128xf32>
    %27 = arith.mulf %25, %26 : vector<16x128xf32>
    %28 = vector.broadcast %9 : vector<1x128xf32> to vector<16x128xf32>
    %29 = arith.addf %27, %28 : vector<16x128xf32>
    %c0_12 = arith.constant 0 : index
    %c0_13 = arith.constant 0 : index
    %30 = vector.load %arg5[%c0_12, %c0_13] : memref<16x128xf32, #tpu.memory_space<vmem>>, vector<16x128xf32>
    tpu.vector_store %arg5[%c0_12, %c0_13], %29 {strides = array<i32>} : memref<16x128xf32, #tpu.memory_space<vmem>>, vector<16x128xf32>,
    return
  }
  func.func @transform_0(%arg0: i32) -> (i32, i32) {
    %c0_i32 = arith.constant 0 : i32
    %c0_i32_0 = arith.constant 0 : i32
    return %arg0, %c0_i32 : i32, i32
  }
  func.func @transform_1(%arg0: i32) -> (i32, i32) {
    %c0_i32 = arith.constant 0 : i32
    %c0_i32_0 = arith.constant 0 : i32
    %c0_i32_1 = arith.constant 0 : i32
    return %c0_i32, %c0_i32_0 : i32, i32
  }
  func.func @transform_2(%arg0: i32) -> (i32, i32) {
    %c0_i32 = arith.constant 0 : i32
    %c0_i32_0 = arith.constant 0 : i32
    %c0_i32_1 = arith.constant 0 : i32
    return %c0_i32, %c0_i32_0 : i32, i32
  }
  func.func @transform_3(%arg0: i32) -> (i32, i32) {
    %c0_i32 = arith.constant 0 : i32
    %c0_i32_0 = arith.constant 0 : i32
    %c0_i32_1 = arith.constant 0 : i32
    return %c0_i32, %c0_i32_0 : i32, i32
  }
  func.func @transform_4(%arg0: i32) -> (i32, i32) {
    %c0_i32 = arith.constant 0 : i32
    %c0_i32_0 = arith.constant 0 : i32
    return %arg0, %c0_i32 : i32, i32
  }
}

</mosaic_0001>

<llo_original>
// kernel: gene_encoder.1
$region0: #{gene_encoder.1}
  #allocation0 [shape = 'u32[]', space=smem, size = 0x4, offset = 0x4, fixed_abs, tag = 'smem constant byte address 0x4 - core index']
  #allocation1 [shape = 'u32[144,128]{1,0:T(1,128)}', space=vmem, size = 0x12000, scoped, tag = 'internal scratch']
  %s0 = inlined_call_operand.vmem [shape: s32[16,1], index: 0, kind: input, shape index: {}]
  %s1 = inlined_call_operand.hbm [shape: f32[64,128], index: 1, kind: input, shape index: {}]
  %s2 = inlined_call_operand.vmem [shape: f32[1,128], index: 2, kind: input, shape index: {}]
  %s3 = inlined_call_operand.vmem [shape: f32[1,128], index: 3, kind: input, shape index: {}]
  %s4 = inlined_call_operand.hbm [shape: f32[16,128], index: 4, kind: output, shape index: {}]
  %s5 = sld [smem:[#allocation0]]
  $region30: #{gene_encoder.1} parent=0
    _
  %s7 = ssub.s32 1, %s5
  %s8 = scalar_select 0, %s7, %s5
  $region1: #{gene_encoder.1} parent=0
    #allocation2 [shape = 'u8[32768]{0}', space=vmem, size = 0x8000, scoped, tag = 'input window, operand 1, single buffered']
    #allocation3 [shape = 's32[1]{0}', space=sflag, size = 0x4, scoped, tag = 'scoped memory for gene_encoder.1']
    #allocation4 [shape = 's32[1]{0}', space=sflag, size = 0x4, scoped, tag = 'scoped memory for gene_encoder.1']
    #allocation5 [shape = 'u8[8192]{0}', space=vmem, size = 0x2000, scoped, tag = 'output window, operand 0, single buffered']
    %9 = vsyncpa [#allocation3], 0
    %10 = vsyncpa [#allocation4], 0
    // Predicated region
    $region2: #{gene_encoder.1} parent=1 // pred_check
      _
    $region3: #{gene_encoder.1} parent=1 // pred_check_branch
      %12 = sbr.rel (0) target = $region5
    $region4: #{gene_encoder.1} parent=1 // pred_region
      _
    $region5: #{gene_encoder.1} parent=1 // pred_fallthru
      _
    // Predicated region
    $region6: #{gene_encoder.1} parent=1 // pred_check
      _
    $region7: #{gene_encoder.1} parent=1 // pred_check_branch
      %14 = sbr.rel (0) target = $region9
    $region8: #{gene_encoder.1} parent=1 // pred_region
      %s16 = ssub.s32 1024, 1024
      %17 = vsyncadd [#allocation3], %s16
      %s18 = sshll.u32 [#allocation2], 4
      %s19 = int_to_ptr.vmem [resolvable:$true] %s18
      %24 = dma.hbm_to_vmem [thread:$0]  %s1, 1024, %s19, [#allocation3], 128, 128, 8
    $region9: #{gene_encoder.1} parent=1 // pred_fallthru
      _
    // Predicated region
    $region10: #{gene_encoder.1} parent=1 // pred_check
      _
    $region11: #{gene_encoder.1} parent=1 // pred_check_branch
      %26 = sbr.rel (0) target = $region13
    $region12: #{gene_encoder.1} parent=1 // pred_region
      _
    $region13: #{gene_encoder.1} parent=1 // pred_fallthru
      _
    // Predicated region
    $region14: #{gene_encoder.1} parent=1 // pred_check
      _
    $region15: #{gene_encoder.1} parent=1 // pred_check_branch
      %28 = sbr.rel (0) target = $region17
    $region16: #{gene_encoder.1} parent=1 // pred_region
      _
    $region17: #{gene_encoder.1} parent=1 // pred_fallthru
      _
    // Predicated region
    $region18: #{gene_encoder.1} parent=1 // pred_check
      _
    $region19: #{gene_encoder.1} parent=1 // pred_check_branch
      %30 = sbr.rel (0) target = $region21
    $region20: #{gene_encoder.1} parent=1 // pred_region
      %31 = dma.done [#allocation3], 1024
    $region21: #{gene_encoder.1} parent=1 // pred_fallthru
      _
    %v32 = vld [vmem:[%s0] sm:$0xff]
    %v33 = vld [vmem:[%s0 + $0x8] sm:$0xff]
    %v34 = vlaneseq
    %v35 = vand.u32 %v34, 127
    %36 = vset.pattern.permute.xlu0 0
    %37 = vperm.xlu0 %36, %v32
    %v38 = vpop.permute.xlu0 %37
    %39 = vset.pattern.permute.xlu0 0
    %40 = vperm.xlu0 %39, %v33
    %v41 = vpop.permute.xlu0 %40
    %vm42 = vcmp.eq.s32.totalorder %v38, %v35
    %vm43 = vcmp.eq.s32.totalorder %v41, %v35
    %v44 = vsel %vm42, 1, 0
    %v45 = vsel %vm43, 1, 0
    %v46 = vcvt.s32.f32 %v44
    %v47 = vcvt.s32.f32 %v45
    %v48 = vld [vmem:[#allocation2] sm:$0xff]
    %v49 = vld [vmem:[#allocation2 + $0x8] sm:$0xff]
    %v50 = vld [vmem:[#allocation2 + $0x10] sm:$0xff]
    %v51 = vld [vmem:[#allocation2 + $0x18] sm:$0xff]
    %v52 = vld [vmem:[#allocation2 + $0x20] sm:$0xff]
    %v53 = vld [vmem:[#allocation2 + $0x28] sm:$0xff]
    %v54 = vld [vmem:[#allocation2 + $0x30] sm:$0xff]
    %v55 = vld [vmem:[#allocation2 + $0x38] sm:$0xff]
    %vm56 = vcmask 523264
    %v58 = vsel %vm56, %v46, 0
    %v61 = vsel %vm56, %v47, 0
    %63 = vmatprep.subr.mxu0 0.0
    %64 = vmatpush1.msra.mxu0 %v48
    %65 = vmatprep.subr.mxu0 0.0
    %66 = vmatpush1.msra.mxu0 %v49
    %67 = vmatprep.subr.mxu0 0.0
    %68 = vmatpush1.msra.mxu0 %v50
    %69 = vmatprep.subr.mxu0 0.0
    %70 = vmatpush1.msra.mxu0 %v51
    %71 = vmatprep.subr.mxu0 0.0
    %72 = vmatpush1.msra.mxu0 %v52
    %73 = vmatprep.subr.mxu0 0.0
    %74 = vmatpush1.msra.mxu0 %v53
    %75 = vmatprep.subr.mxu0 0.0
    %76 = vmatpush1.msra.mxu0 %v54
    %77 = vmatprep.subr.mxu0 0.0
    %78 = vmatpush1.msra.mxu0 %v55
    %79 = vmatprep.subr.mxu0 0.0
    %80 = vmatpush1.msra.mxu0 0.0
    %81 = vmatprep.subr.mxu0 0.0
    %82 = vmatpush1.msra.mxu0 0.0
    %83 = vmatprep.subr.mxu0 0.0
    %84 = vmatpush1.msra.mxu0 0.0
    %85 = vmatprep.subr.mxu0 0.0
    %86 = vmatpush1.msra.mxu0 0.0
    %87 = vmatprep.subr.mxu0 0.0
    %88 = vmatpush1.msra.mxu0 0.0
    %89 = vmatprep.subr.mxu0 0.0
    %90 = vmatpush1.msra.mxu0 0.0
    %91 = vmatprep.subr.mxu0 0.0
    %92 = vmatpush1.msra.mxu0 0.0
    %93 = vmatprep.subr.mxu0 0.0
    %94 = vmatpush1.msra.mxu0 0.0
    %95 = vmatprep.subr.mxu0 0.0
    %96 = vmatpush1.msra.mxu0 0.0
    %97 = vmatprep.subr.mxu0 0.0
    %98 = vmatpush1.msra.mxu0 0.0
    %99 = vmatprep.subr.mxu0 0.0
    %100 = vmatpush1.msra.mxu0 0.0
    %101 = vmatprep.subr.mxu0 0.0
    %102 = vmatpush1.msra.mxu0 0.0
    %103 = vmatprep.subr.mxu0 0.0
    %104 = vmatpush1.msra.mxu0 0.0
    %105 = vmatprep.subr.mxu0 0.0
    %106 = vmatpush1.msra.mxu0 0.0
    %107 = vmatprep.subr.mxu0 0.0
    %108 = vmatpush1.msra.mxu0 0.0
    %109 = vmatprep.subr.mxu0 0.0
    %110 = vmatpush1.msra.mxu0 0.0
    %111 = vmatprep.subr.mxu0 0.0
    %112 = vmatpush1.msra.mxu0 0.0
    %113 = vmatprep.subr.mxu0 0.0
    %114 = vmatpush1.msra.mxu0 0.0
    %115 = vmatprep.subr.mxu0 0.0
    %116 = vmatpush1.msra.mxu0 0.0
    %117 = vmatprep.subr.mxu0 0.0
    %118 = vmatpush1.msra.mxu0 0.0
    %119 = vmatprep.subr.mxu0 0.0
    %120 = vmatpush1.msra.mxu0 0.0
    %121 = vmatprep.subr.mxu0 0.0
    %122 = vmatpush1.msra.mxu0 0.0
    %123 = vmatprep.subr.mxu0 0.0
    %124 = vmatpush1.msra.mxu0 0.0
    %125 = vmatprep.subr.mxu0 0.0
    %126 = vmatpush1.msra.mxu0 0.0
    %127 = vmatprep.mubr.f32.mxu0 0.0
    %128 = vmatmul.mubr.f32.gmra.mrb[0].mxu0 %v58
    %v129 = vpop.f32.mrb[0].mxu0
    %v130 = vadd.f32 0.0, %v129
    %v131 = vpop.f32.mrb[0].mxu0
    %132 = vmatprep.mubr.f32.mxu0 0.0
    %133 = vmatmul.mubr.f32.gmra.mrb[0].mxu0 %v61
    %v134 = vpop.f32.mrb[0].mxu0
    %v135 = vadd.f32 0.0, %v134
    %v136 = vpop.f32.mrb[0].mxu0
    %137 = vdwg.mxu0
    %v138 = vld [vmem:[%s2] sm:$0x1]
    %v139 = vld [vmem:[%s3] sm:$0x1]
    %140 = vadd.xlane.f32.xlu0 %v130
    %v141 = vpop.xlane.xlu0 %140
    %142 = vadd.xlane.f32.xlu0 %v135
    %v143 = vpop.xlane.xlu0 %142
    %v144 = vrcp.pop 128.0
    %v145 = vmul.f32 %v141, %v144
    %v146 = vmul.f32 %v143, %v144
    %v147 = vsub.f32 %v130, %v145
    %v148 = vsub.f32 %v135, %v146
    %v149 = vmul.f32 %v147, %v147
    %v150 = vmul.f32 %v148, %v148
    %151 = vadd.xlane.f32.xlu0 %v149
    %v152 = vpop.xlane.xlu0 %151
    %153 = vadd.xlane.f32.xlu0 %v150
    %v154 = vpop.xlane.xlu0 %153
    %v155 = vmul.f32 %v152, %v144
    %v156 = vmul.f32 %v154, %v144
    %v157 = vadd.f32 %v155, 1e-05
    %v158 = vadd.f32 %v156, 1e-05
    %v159 = vrsqrt.pop %v157
    %v160 = vrsqrt.pop %v158
    %v161 = vmul.f32 %v147, %v159
    %v162 = vmul.f32 %v148, %v160
    %v164 = vlaneseq
    %v165 = vshrl.u32 %v164, 7
    %v166 = vsub.s32 0, %v165
    %v167 = vrot.slane %v138, %v166
    %v169 = vmul.f32 %v161, %v167
    %v170 = vmul.f32 %v162, %v167
    %v172 = vlaneseq
    %v173 = vshrl.u32 %v172, 7
    %v174 = vsub.s32 0, %v173
    %v175 = vrot.slane %v139, %v174
    %v177 = vadd.f32 %v169, %v175
    %v178 = vadd.f32 %v170, %v175
    %179 = vst [vmem:[#allocation5] sm:$0xff] %v177
    %180 = vst [vmem:[#allocation5 + $0x8] sm:$0xff] %v178
    // Predicated region
    $region22: #{gene_encoder.1} parent=1 // pred_check
      _
    $region23: #{gene_encoder.1} parent=1 // pred_check_branch
      %182 = sbr.rel (0) target = $region25
    $region24: #{gene_encoder.1} parent=1 // pred_region
      %s184 = ssub.s32 256, 256
      %185 = vsyncadd [#allocation4], %s184
      %s186 = sshll.u32 [#allocation5], 4
      %s187 = int_to_ptr.vmem [resolvable:$true] %s186
      %192 = dma.vmem_to_hbm [thread:$0]  %s187, 256, %s4, [#allocation4], 128, 128, 8
    $region25: #{gene_encoder.1} parent=1 // pred_fallthru
      _
    // Predicated region
    $region26: #{gene_encoder.1} parent=1 // pred_check
      _
    $region27: #{gene_encoder.1} parent=1 // pred_check_branch
      %194 = sbr.rel (0) target = $region29
    $region28: #{gene_encoder.1} parent=1 // pred_region
      %195 = dma.done [#allocation4], 256
    $region29: #{gene_encoder.1} parent=1 // pred_fallthru
      _
    %196 = vsyncpa [#allocation3], 1
    %197 = vsyncpa [#allocation4], 1

</llo_original>
